<compile_context>
chip_gen: v6e
topology: v6e:2x2x1
jax: 0.10.0
libtpu: 0.0.40
codegen_flags: <defaults>
</compile_context>

<pallas_src>
import functools

import jax
import jax.numpy as jnp
from jax import lax
from jax.experimental import pallas as pl
from jax.experimental.pallas import tpu as pltpu

LN_EPS = 1e-5  # nn.LayerNorm default


def _round_up(x, m):
    return ((x + m - 1) // m) * m


def _default_bf16_elementwise():
    """bf16 elementwise only where the VPU executes bf16 natively (v6e/v7x)."""
    try:
        kind = jax.devices()[0].device_kind.lower()
    except Exception:
        return False
    return not any(v in kind for v in ("v2", "v3", "v4", "v5"))


def _actor_kernel(x_ref, w1_ref, w2_ref, w3_ref, vec_ref, o_ref, *,
                  fc1_dims, fc2_dims, fc1_pad, fc2_pad, bf16_elementwise):
    """One batch tile: 3 matmuls (bias folded) + 2 LayerNorms + relu + sigmoid."""
    x = x_ref[...]  # (TB, in_aug) bf16, already [state | 1 | 0...]

    # Packed LayerNorm params (static slices of one small resident block).
    g1 = vec_ref[0:1, 0:fc1_pad]
    be1 = vec_ref[1:2, 0:fc1_pad]   # has 1.0 at the "ones lane" (index fc1_dims)
    g2 = vec_ref[2:3, 0:fc2_pad]
    be2 = vec_ref[3:4, 0:fc2_pad]   # has 1.0 at the "ones lane" (index fc2_dims)

    def ln_relu(h, g, be, true_width):
        # f32 statistics.  Padded lanes of h are exactly 0, so sums over the
        # full (lane-dense) width divided by the true width are exact.
        inv_n = 1.0 / true_width
        mean = jnp.sum(h, axis=-1, keepdims=True) * inv_n
        meansq = jnp.sum(h * h, axis=-1, keepdims=True) * inv_n
        var = jnp.maximum(meansq - mean * mean, 0.0)
        scale = lax.rsqrt(var + LN_EPS)
        if bf16_elementwise:
            # Normalize/affine/ReLU in bf16 (2x VPU packing); feeds bf16 matmul.
            y = ((h - mean) * scale).astype(jnp.bfloat16)
            y = y * g.astype(jnp.bfloat16) + be.astype(jnp.bfloat16)
            return jnp.maximum(y, 0.0)
        y = (h - mean) * scale * g + be
        return jnp.maximum(y, 0.0).astype(jnp.bfloat16)

    # fc1 (+bias via ones column of x) -> LN -> relu
    h = jnp.dot(x, w1_ref[...], preferred_element_type=jnp.float32)
    h = ln_relu(h, g1, be1, float(fc1_dims))

    # fc2 (+bias via beta-injected ones lane) -> LN -> relu
    h = jnp.dot(h, w2_ref[...], preferred_element_type=jnp.float32)
    h = ln_relu(h, g2, be2, float(fc2_dims))

    # mu head (+bias via ones lane) -> sigmoid
    out = jnp.dot(h, w3_ref[...], preferred_element_type=jnp.float32)
    o_ref[...] = jax.nn.sigmoid(out).astype(o_ref.dtype)
    # TODO(synk): n_actions=4 -> the output store is a masked 4-of-128-lane slab;
    # lane-dense packing would require stacking multiple heads/timesteps.


def actor_forward(state, packed, *, batch_tile=1024, bf16_elementwise=None,
                  vmem_limit_bytes=None):
    """state: (B, input_dims) f32.  packed from pack_params()."""
    w1, w2, w3, vec, fc1_dims, fc2_dims = packed
    in_aug, fc1_pad = w1.shape
    fc2_pad = w2.shape[1]
    n_actions = w3.shape[1]
    batch, input_dims = state.shape
    assert input_dims + 1 <= in_aug, "packed params do not match this input width"

    if bf16_elementwise is None:
        bf16_elementwise = _default_bf16_elementwise()

    # Batch tile: multiple of 16 (bf16 sublane packing), capped by batch_tile,
    # and split so there are >=2 grid steps whenever batch allows it (so the
    # "parallel" axis actually shards across both TensorCores on v7x).
    half = _round_up(max(1, (batch + 1) // 2), 16)
    tb = max(16, min(batch_tile, half))
    batch_p = _round_up(batch, tb)
    grid = (batch_p // tb,)

    # Augment + pad + cast the streamed input in the wrapper (one fused XLA op):
    # [state | 1 | 0...0] as bf16, rows padded to the tiled batch.
    x = jnp.concatenate(
        [state.astype(jnp.float32), jnp.ones((batch, 1), jnp.float32)], axis=1)
    x = jnp.pad(x, ((0, batch_p - batch), (0, in_aug - (input_dims + 1))))
    x = x.astype(jnp.bfloat16)

    # Raise the scoped-VMEM limit only when the working set needs it (matters
    # for v5e's 16 MiB default with large batch tiles / TD3-sized layers).
    if vmem_limit_bytes is None:
        est = (2 * tb * in_aug * 2                     # double-buffered state tiles
               + 2 * tb * n_actions * 4                # double-buffered out tiles
               + 2 * 2 * (w1.size + w2.size + w3.size) # resident bf16 weights
               + 2 * 4 * vec.size                      # resident f32 vec
               + 6 * tb * max(fc1_pad, fc2_pad) * 4)   # f32/bf16 intermediates
        if est > 12 * 1024 * 1024:
            vmem_limit_bytes = min(est + (8 << 20), 96 << 20)

    cp_kwargs = dict(dimension_semantics=("parallel",))
    if vmem_limit_bytes is not None:
        cp_kwargs["vmem_limit_bytes"] = int(vmem_limit_bytes)

    kernel = functools.partial(
        _actor_kernel,
        fc1_dims=fc1_dims, fc2_dims=fc2_dims,
        fc1_pad=fc1_pad, fc2_pad=fc2_pad,
        bf16_elementwise=bool(bf16_elementwise))

    # Note: w1/w2/w3/vec are grid-invariant; pl.Buffered(1) single-buffering
    # would halve their resident VMEM, but they are tiny here so we keep the
    # default pipelining for robustness.
    out = pl.pallas_call(
        kernel,
        out_shape=jax.ShapeDtypeStruct((batch_p, n_actions), jnp.float32),
        grid=grid,
        in_specs=[
            pl.BlockSpec((tb, in_aug), lambda i: (i, 0)),      # augmented state tile
            pl.BlockSpec(w1.shape, lambda i: (0, 0)),          # resident weights
            pl.BlockSpec(w2.shape, lambda i: (0, 0)),
            pl.BlockSpec(w3.shape, lambda i: (0, 0)),
            pl.BlockSpec(vec.shape, lambda i: (0, 0)),         # packed gamma/beta
        ],
        out_specs=pl.BlockSpec((tb, n_actions), lambda i: (i, 0)),
        compiler_params=pltpu.CompilerParams(**cp_kwargs),
    )(x, w1, w2, w3, vec)

    return out[:batch]


def init_params(key, input_dims, fc1_dims, fc2_dims, n_actions):
    """Raw f32 params mirroring the PyTorch __init__ bounds.

    PyTorch: f1 = 1/sqrt(fc1.weight.size(0)) = 1/sqrt(fc1_dims),
             f2 = 1/sqrt(fc2_dims), f3 = 0.003.
    Weights stored transposed: (in_features, out_features). LayerNorm affine
    params default to ones / zeros.
    """
    k1, k2, k3, k4, k5, k6 = jax.random.split(key, 6)
    f1 = 1.0 / jnp.sqrt(jnp.float32(fc1_dims))
    f2 = 1.0 / jnp.sqrt(jnp.float32(fc2_dims))
    f3 = 0.003

    w1 = jax.random.uniform(k1, (input_dims, fc1_dims), jnp.float32, -f1, f1)
    b1 = jax.random.uniform(k2, (1, fc1_dims), jnp.float32, -f1, f1)
    g1 = jnp.ones((1, fc1_dims), jnp.float32)
    be1 = jnp.zeros((1, fc1_dims), jnp.float32)

    w2 = jax.random.uniform(k3, (fc1_dims, fc2_dims), jnp.float32, -f2, f2)
    b2 = jax.random.uniform(k4, (1, fc2_dims), jnp.float32, -f2, f2)
    g2 = jnp.ones((1, fc2_dims), jnp.float32)
    be2 = jnp.zeros((1, fc2_dims), jnp.float32)

    w3 = jax.random.uniform(k5, (fc2_dims, n_actions), jnp.float32, -f3, f3)
    b3 = jax.random.uniform(k6, (1, n_actions), jnp.float32, -f3, f3)

    return (w1, b1, g1, be1, w2, b2, g2, be2, w3, b3)


def pack_params(raw_params):
    """Kernel-side layout.

    * Weights: bf16, (in_features, out_features), zero-padded to lane-dense
      widths, with the bias folded in as an extra row (driven by the ones
      column of the state for fc1, and by a beta-injected ones lane for
      fc2/mu).
    * vec: one (8, Fmax) f32 block holding [g1, be1, g2, be2, 0...]; beta rows
      carry a 1.0 on the "ones lane" right after the true width.
    """
    (w1, b1, g1, be1, w2, b2, g2, be2, w3, b3) = raw_params
    input_dims, fc1_dims = w1.shape
    fc2_dims = w2.shape[1]
    n_actions = w3.shape[1]

    in_aug = _round_up(input_dims + 1, 128)
    fc1_pad = _round_up(fc1_dims + 1, 128)
    fc2_pad = _round_up(fc2_dims + 1, 128)
    fmax = max(fc1_pad, fc2_pad)

    def aug_weight(w, b, rows, rows_pad, cols, cols_pad):
        m = jnp.zeros((rows_pad, cols_pad), jnp.float32)
        m = m.at[:rows, :cols].set(w.astype(jnp.float32))
        m = m.at[rows, :cols].set(b.reshape(-1).astype(jnp.float32))  # bias row
        return m.astype(jnp.bfloat16)

    w1a = aug_weight(w1, b1, input_dims, in_aug, fc1_dims, fc1_pad)
    w2a = aug_weight(w2, b2, fc1_dims, fc1_pad, fc2_dims, fc2_pad)
    w3a = aug_weight(w3, b3, fc2_dims, fc2_pad, n_actions, n_actions)

    def gb_row(v, width, ones_lane=None):
        r = jnp.zeros((1, fmax), jnp.float32)
        r = r.at[0, :width].set(v.reshape(-1).astype(jnp.float32))
        if ones_lane is not None:
            r = r.at[0, ones_lane].set(1.0)
        return r

    vec = jnp.concatenate([
        gb_row(g1, fc1_dims),
        gb_row(be1, fc1_dims, ones_lane=fc1_dims),
        gb_row(g2, fc2_dims),
        gb_row(be2, fc2_dims, ones_lane=fc2_dims),
        jnp.zeros((4, fmax), jnp.float32),
    ], axis=0)  # (8, fmax)

    return (w1a, w2a, w3a, vec, fc1_dims, fc2_dims)


def reference_forward(state, raw_params):
    """Pure-f32 JAX reference with PyTorch semantics (Linear + LayerNorm + relu + sigmoid)."""
    (w1, b1, g1, be1, w2, b2, g2, be2, w3, b3) = raw_params

    def ln(h, g, be):
        mu = jnp.mean(h, axis=-1, keepdims=True)
        var = jnp.mean((h - mu) ** 2, axis=-1, keepdims=True)
        return (h - mu) * lax.rsqrt(var + LN_EPS) * g + be

    h = jnp.maximum(ln(state @ w1 + b1, g1, be1), 0.0)
    h = jnp.maximum(ln(h @ w2 + b2, g2, be2), 0.0)
    return jax.nn.sigmoid(h @ w3 + b3)


if __name__ == "__main__":
    # Small shapes consistent with the module: state is (batch, input_dims).
    batch, input_dims, fc1_dims, fc2_dims, n_actions = 8, 16, 64, 32, 4

    key = jax.random.PRNGKey(0)
    pkey, skey, skey2 = jax.random.split(key, 3)
    raw_params = init_params(pkey, input_dims, fc1_dims, fc2_dims, n_actions)
    packed = pack_params(raw_params)

    # Check 1: tiny batch (single grid step, padded rows).
    state = jax.random.normal(skey, (batch, input_dims), jnp.float32)
    out = jax.block_until_ready(actor_forward(state, packed))
    ref = reference_forward(state, raw_params)
    assert out.shape == (batch, n_actions)
    err = float(jnp.max(jnp.abs(out - ref)))
    assert err < 5e-3, f"max abs err (small batch) = {err}"

    # Check 2: batch that forces >=2 grid steps plus row padding.
    state2 = jax.random.normal(skey2, (40, input_dims), jnp.float32)
    out2 = jax.block_until_ready(actor_forward(state2, packed))
    ref2 = reference_forward(state2, raw_params)
    err2 = float(jnp.max(jnp.abs(out2 - ref2)))
    assert out2.shape == (40, n_actions)
    assert err2 < 5e-3, f"max abs err (multi-tile) = {err2}"

    print("KERNEL_OK")
</pallas_src>

<mosaic_0001>
module attributes {stable_mosaic.version = 11 : i64} {
  func.func @_actor_kernel(%arg0: i32, %arg1: memref<16x128xbf16, #tpu.memory_space<vmem>>, %arg2: memref<128x128xbf16, #tpu.memory_space<vmem>>, %arg3: memref<128x128xbf16, #tpu.memory_space<vmem>>, %arg4: memref<128x4xbf16, #tpu.memory_space<vmem>>, %arg5: memref<8x128xf32, #tpu.memory_space<vmem>>, %arg6: memref<16x4xf32, #tpu.memory_space<vmem>>) attributes {dimension_semantics = [#tpu.dimension_semantics<parallel>], iteration_bounds = array<i64: 1>, scalar_prefetch = 0 : i64, scratch_operands = 0 : i64, tpu.core_type = #tpu.core_type<tc>, window_params = [{transform_indices = @transform_0, window_bounds = array<i64: 16, 128>}, {pipeline_mode = #tpu.pipeline_mode<synchronous>, transform_indices = @transform_1, window_bounds = array<i64: 128, 128>}, {pipeline_mode = #tpu.pipeline_mode<synchronous>, transform_indices = @transform_2, window_bounds = array<i64: 128, 128>}, {pipeline_mode = #tpu.pipeline_mode<synchronous>, transform_indices = @transform_3, window_bounds = array<i64: 128, 4>}, {pipeline_mode = #tpu.pipeline_mode<synchronous>, transform_indices = @transform_4, window_bounds = array<i64: 8, 128>}, {transform_indices = @transform_5, window_bounds = array<i64: 16, 4>}]} {
    %c0 = arith.constant 0 : index
    %c0_0 = arith.constant 0 : index
    %0 = vector.load %arg1[%c0, %c0_0] : memref<16x128xbf16, #tpu.memory_space<vmem>>, vector<16x128xbf16>
    %c0_1 = arith.constant 0 : index
    %c0_2 = arith.constant 0 : index
    %1 = vector.load %arg5[%c0_1, %c0_2] : memref<8x128xf32, #tpu.memory_space<vmem>>, vector<1x128xf32>
    %c1 = arith.constant 1 : index
    %c0_3 = arith.constant 0 : index
    %2 = vector.load %arg5[%c1, %c0_3] : memref<8x128xf32, #tpu.memory_space<vmem>>, vector<1x128xf32>
    %c2 = arith.constant 2 : index
    %c0_4 = arith.constant 0 : index
    %3 = vector.load %arg5[%c2, %c0_4] : memref<8x128xf32, #tpu.memory_space<vmem>>, vector<1x128xf32>
    %c3 = arith.constant 3 : index
    %c0_5 = arith.constant 0 : index
    %4 = vector.load %arg5[%c3, %c0_5] : memref<8x128xf32, #tpu.memory_space<vmem>>, vector<1x128xf32>
    %c0_6 = arith.constant 0 : index
    %c0_7 = arith.constant 0 : index
    %5 = vector.load %arg2[%c0_6, %c0_7] : memref<128x128xbf16, #tpu.memory_space<vmem>>, vector<128x128xbf16>
    %cst = arith.constant dense<0.000000e+00> : vector<16x128xf32>
    %6 = tpu.matmul %0, %5, %cst {dimension_numbers = #tpu.dot_dimension_numbers<[1], [0], [0], [1], [0, 0, 1, 1], [], []>} : vector<16x128xbf16>, vector<128x128xbf16>, vector<16x128xf32> -> vector<16x128xf32>
    %cst_8 = arith.constant dense<0.000000e+00> : vector<16xf32>
    %7 = vector.multi_reduction <add>, %6, %cst_8 [1] : vector<16x128xf32> to vector<16xf32>
    %8 = vector.shape_cast %7 : vector<16xf32> to vector<16x1xf32>
    %cst_9 = arith.constant 1.562500e-02 : f32
    %9 = vector.broadcast %cst_9 : f32 to vector<16x1xf32>
    %10 = arith.mulf %8, %9 : vector<16x1xf32>
    %11 = arith.mulf %6, %6 : vector<16x128xf32>
    %cst_10 = arith.constant dense<0.000000e+00> : vector<16xf32>
    %12 = vector.multi_reduction <add>, %11, %cst_10 [1] : vector<16x128xf32> to vector<16xf32>
    %13 = vector.shape_cast %12 : vector<16xf32> to vector<16x1xf32>
    %cst_11 = arith.constant 1.562500e-02 : f32
    %14 = vector.broadcast %cst_11 : f32 to vector<16x1xf32>
    %15 = arith.mulf %13, %14 : vector<16x1xf32>
    %16 = arith.mulf %10, %10 : vector<16x1xf32>
    %17 = arith.subf %15, %16 : vector<16x1xf32>
    %cst_12 = arith.constant 0.000000e+00 : f32
    %18 = vector.broadcast %cst_12 : f32 to vector<16x1xf32>
    %19 = arith.maximumf %17, %18 : vector<16x1xf32>
    %cst_13 = arith.constant 9.99999974E-6 : f32
    %20 = vector.broadcast %cst_13 : f32 to vector<16x1xf32>
    %21 = arith.addf %19, %20 : vector<16x1xf32>
    %22 = math.rsqrt %21 : vector<16x1xf32>
    %23 = vector.broadcast %10 : vector<16x1xf32> to vector<16x128xf32>
    %24 = arith.subf %6, %23 : vector<16x128xf32>
    %25 = vector.broadcast %22 : vector<16x1xf32> to vector<16x128xf32>
    %26 = arith.mulf %24, %25 : vector<16x128xf32>
    %27 = arith.truncf %26 : vector<16x128xf32> to vector<16x128xbf16>
    %28 = arith.truncf %1 : vector<1x128xf32> to vector<1x128xbf16>
    %29 = vector.broadcast %28 : vector<1x128xbf16> to vector<16x128xbf16>
    %30 = arith.mulf %27, %29 : vector<16x128xbf16>
    %31 = arith.truncf %2 : vector<1x128xf32> to vector<1x128xbf16>
    %32 = vector.broadcast %31 : vector<1x128xbf16> to vector<16x128xbf16>
    %33 = arith.addf %30, %32 : vector<16x128xbf16>
    %cst_14 = arith.constant 0.000000e+00 : bf16
    %34 = vector.broadcast %cst_14 : bf16 to vector<16x128xbf16>
    %35 = arith.maximumf %33, %34 : vector<16x128xbf16>
    %c0_15 = arith.constant 0 : index
    %c0_16 = arith.constant 0 : index
    %36 = vector.load %arg3[%c0_15, %c0_16] : memref<128x128xbf16, #tpu.memory_space<vmem>>, vector<128x128xbf16>
    %cst_17 = arith.constant dense<0.000000e+00> : vector<16x128xf32>
    %37 = tpu.matmul %35, %36, %cst_17 {dimension_numbers = #tpu.dot_dimension_numbers<[1], [0], [0], [1], [0, 0, 1, 1], [], []>} : vector<16x128xbf16>, vector<128x128xbf16>, vector<16x128xf32> -> vector<16x128xf32>
    %cst_18 = arith.constant dense<0.000000e+00> : vector<16xf32>
    %38 = vector.multi_reduction <add>, %37, %cst_18 [1] : vector<16x128xf32> to vector<16xf32>
    %39 = vector.shape_cast %38 : vector<16xf32> to vector<16x1xf32>
    %cst_19 = arith.constant 3.125000e-02 : f32
    %40 = vector.broadcast %cst_19 : f32 to vector<16x1xf32>
    %41 = arith.mulf %39, %40 : vector<16x1xf32>
    %42 = arith.mulf %37, %37 : vector<16x128xf32>
    %cst_20 = arith.constant dense<0.000000e+00> : vector<16xf32>
    %43 = vector.multi_reduction <add>, %42, %cst_20 [1] : vector<16x128xf32> to vector<16xf32>
    %44 = vector.shape_cast %43 : vector<16xf32> to vector<16x1xf32>
    %cst_21 = arith.constant 3.125000e-02 : f32
    %45 = vector.broadcast %cst_21 : f32 to vector<16x1xf32>
    %46 = arith.mulf %44, %45 : vector<16x1xf32>
    %47 = arith.mulf %41, %41 : vector<16x1xf32>
    %48 = arith.subf %46, %47 : vector<16x1xf32>
    %cst_22 = arith.constant 0.000000e+00 : f32
    %49 = vector.broadcast %cst_22 : f32 to vector<16x1xf32>
    %50 = arith.maximumf %48, %49 : vector<16x1xf32>
    %cst_23 = arith.constant 9.99999974E-6 : f32
    %51 = vector.broadcast %cst_23 : f32 to vector<16x1xf32>
    %52 = arith.addf %50, %51 : vector<16x1xf32>
    %53 = math.rsqrt %52 : vector<16x1xf32>
    %54 = vector.broadcast %41 : vector<16x1xf32> to vector<16x128xf32>
    %55 = arith.subf %37, %54 : vector<16x128xf32>
    %56 = vector.broadcast %53 : vector<16x1xf32> to vector<16x128xf32>
    %57 = arith.mulf %55, %56 : vector<16x128xf32>
    %58 = arith.truncf %57 : vector<16x128xf32> to vector<16x128xbf16>
    %59 = arith.truncf %3 : vector<1x128xf32> to vector<1x128xbf16>
    %60 = vector.broadcast %59 : vector<1x128xbf16> to vector<16x128xbf16>
    %61 = arith.mulf %58, %60 : vector<16x128xbf16>
    %62 = arith.truncf %4 : vector<1x128xf32> to vector<1x128xbf16>
    %63 = vector.broadcast %62 : vector<1x128xbf16> to vector<16x128xbf16>
    %64 = arith.addf %61, %63 : vector<16x128xbf16>
    %cst_24 = arith.constant 0.000000e+00 : bf16
    %65 = vector.broadcast %cst_24 : bf16 to vector<16x128xbf16>
    %66 = arith.maximumf %64, %65 : vector<16x128xbf16>
    %c0_25 = arith.constant 0 : index
    %c0_26 = arith.constant 0 : index
    %67 = vector.load %arg4[%c0_25, %c0_26] : memref<128x4xbf16, #tpu.memory_space<vmem>>, vector<128x4xbf16>
    %cst_27 = arith.constant dense<0.000000e+00> : vector<16x4xf32>
    %68 = tpu.matmul %66, %67, %cst_27 {dimension_numbers = #tpu.dot_dimension_numbers<[1], [0], [0], [1], [0, 0, 1, 1], [], []>} : vector<16x128xbf16>, vector<128x4xbf16>, vector<16x4xf32> -> vector<16x4xf32>
    %69 = arith.negf %68 : vector<16x4xf32>
    %70 = math.exp %69 : vector<16x4xf32>
    %cst_28 = arith.constant 1.000000e+00 : f32
    %71 = vector.broadcast %cst_28 : f32 to vector<16x4xf32>
    %72 = arith.addf %71, %70 : vector<16x4xf32>
    %73 = arith.divf %71, %72 : vector<16x4xf32>
    %c0_29 = arith.constant 0 : index
    %c0_30 = arith.constant 0 : index
    %74 = vector.load %arg6[%c0_29, %c0_30] : memref<16x4xf32, #tpu.memory_space<vmem>>, vector<16x4xf32>
    tpu.vector_store %arg6[%c0_29, %c0_30], %73 {strides = array<i32>} : memref<16x4xf32, #tpu.memory_space<vmem>>, vector<16x4xf32>,
    return
  }
  func.func @transform_0(%arg0: i32) -> (i32, i32) {
    %c0_i32 = arith.constant 0 : i32
    %c0_i32_0 = arith.constant 0 : i32
    return %arg0, %c0_i32 : i32, i32
  }
  func.func @transform_1(%arg0: i32) -> (i32, i32) {
    %c0_i32 = arith.constant 0 : i32
    %c0_i32_0 = arith.constant 0 : i32
    %c0_i32_1 = arith.constant 0 : i32
    return %c0_i32, %c0_i32_0 : i32, i32
  }
  func.func @transform_2(%arg0: i32) -> (i32, i32) {
    %c0_i32 = arith.constant 0 : i32
    %c0_i32_0 = arith.constant 0 : i32
    %c0_i32_1 = arith.constant 0 : i32
    return %c0_i32, %c0_i32_0 : i32, i32
  }
  func.func @transform_3(%arg0: i32) -> (i32, i32) {
    %c0_i32 = arith.constant 0 : i32
    %c0_i32_0 = arith.constant 0 : i32
    %c0_i32_1 = arith.constant 0 : i32
    return %c0_i32, %c0_i32_0 : i32, i32
  }
  func.func @transform_4(%arg0: i32) -> (i32, i32) {
    %c0_i32 = arith.constant 0 : i32
    %c0_i32_0 = arith.constant 0 : i32
    %c0_i32_1 = arith.constant 0 : i32
    return %c0_i32, %c0_i32_0 : i32, i32
  }
  func.func @transform_5(%arg0: i32) -> (i32, i32) {
    %c0_i32 = arith.constant 0 : i32
    %c0_i32_0 = arith.constant 0 : i32
    return %arg0, %c0_i32 : i32, i32
  }
}

</mosaic_0001>

<llo_original>
// kernel: tpu_custom_call.1
$region0: #{tpu_custom_call.1}
  #allocation0 [shape = 'u32[]', space=smem, size = 0x4, offset = 0x4, fixed_abs, tag = 'smem constant byte address 0x4 - core index']
  #allocation1 [shape = 'u32[144,128]{1,0:T(1,128)}', space=vmem, size = 0x12000, scoped, tag = 'internal scratch']
  %s0 = inlined_call_operand.hbm [shape: bf16[16,128], index: 0, kind: input, shape index: {}]
  %s1 = inlined_call_operand.vmem [shape: bf16[128,128], index: 1, kind: input, shape index: {}]
  %s2 = inlined_call_operand.hbm [shape: bf16[128,128], index: 2, kind: input, shape index: {}]
  %s3 = inlined_call_operand.vmem [shape: bf16[128,4], index: 3, kind: input, shape index: {}]
  %s4 = inlined_call_operand.vmem [shape: f32[8,128], index: 4, kind: input, shape index: {}]
  %s5 = inlined_call_operand.vmem [shape: f32[16,4], index: 5, kind: output, shape index: {}]
  %s6 = sld [smem:[#allocation0]]
  $region38: #{tpu_custom_call.1} parent=0
    _
  %s8 = ssub.s32 1, %s6
  %s9 = scalar_select 0, %s8, %s6
  $region1: #{tpu_custom_call.1} parent=0
    #allocation2 [shape = 'u8[4096]{0}', space=vmem, size = 0x1000, scoped, tag = 'input window, operand 0, single buffered']
    #allocation3 [shape = 's32[1]{0}', space=sflag, size = 0x4, scoped, tag = 'scoped memory for tpu_custom_call.1']
    #allocation4 [shape = 'u8[32768]{0}', space=vmem, size = 0x8000, scoped, tag = 'input window, operand 2, single buffered']
    #allocation5 [shape = 's32[1]{0}', space=sflag, size = 0x4, scoped, tag = 'scoped memory for tpu_custom_call.1']
    %10 = vsyncpa [#allocation3], 0
    %11 = vsyncpa [#allocation5], 0
    // Predicated region
    $region2: #{tpu_custom_call.1} parent=1 // pred_check
      _
    $region3: #{tpu_custom_call.1} parent=1 // pred_check_branch
      %13 = sbr.rel (0) target = $region5
    $region4: #{tpu_custom_call.1} parent=1 // pred_region
      %s15 = ssub.s32 128, 128
      %16 = vsyncadd [#allocation3], %s15
      %s17 = sshll.u32 [#allocation2], 4
      %s18 = int_to_ptr.vmem [resolvable:$true] %s17
      %23 = dma.hbm_to_vmem [thread:$0]  %s0, 128, %s18, [#allocation3], 64, 64, 4
    $region5: #{tpu_custom_call.1} parent=1 // pred_fallthru
      _
    // Predicated region
    $region6: #{tpu_custom_call.1} parent=1 // pred_check
      _
    $region7: #{tpu_custom_call.1} parent=1 // pred_check_branch
      %25 = sbr.rel (0) target = $region9
    $region8: #{tpu_custom_call.1} parent=1 // pred_region
      _
    $region9: #{tpu_custom_call.1} parent=1 // pred_fallthru
      _
    // Predicated region
    $region10: #{tpu_custom_call.1} parent=1 // pred_check
      _
    $region11: #{tpu_custom_call.1} parent=1 // pred_check_branch
      %27 = sbr.rel (0) target = $region13
    $region12: #{tpu_custom_call.1} parent=1 // pred_region
      %s29 = ssub.s32 1024, 1024
      %30 = vsyncadd [#allocation5], %s29
      %s31 = sshll.u32 [#allocation4], 4
      %s32 = int_to_ptr.vmem [resolvable:$true] %s31
      %37 = dma.hbm_to_vmem [thread:$0]  %s2, 1024, %s32, [#allocation5], 64, 64, 4
    $region13: #{tpu_custom_call.1} parent=1 // pred_fallthru
      _
    // Predicated region
    $region14: #{tpu_custom_call.1} parent=1 // pred_check
      _
    $region15: #{tpu_custom_call.1} parent=1 // pred_check_branch
      %39 = sbr.rel (0) target = $region17
    $region16: #{tpu_custom_call.1} parent=1 // pred_region
      _
    $region17: #{tpu_custom_call.1} parent=1 // pred_fallthru
      _
    // Predicated region
    $region18: #{tpu_custom_call.1} parent=1 // pred_check
      _
    $region19: #{tpu_custom_call.1} parent=1 // pred_check_branch
      %41 = sbr.rel (0) target = $region21
    $region20: #{tpu_custom_call.1} parent=1 // pred_region
      _
    $region21: #{tpu_custom_call.1} parent=1 // pred_fallthru
      _
    // Predicated region
    $region22: #{tpu_custom_call.1} parent=1 // pred_check
      _
    $region23: #{tpu_custom_call.1} parent=1 // pred_check_branch
      %43 = sbr.rel (0) target = $region25
    $region24: #{tpu_custom_call.1} parent=1 // pred_region
      %44 = dma.done [#allocation3], 128
    $region25: #{tpu_custom_call.1} parent=1 // pred_fallthru
      _
    // Predicated region
    $region26: #{tpu_custom_call.1} parent=1 // pred_check
      _
    $region27: #{tpu_custom_call.1} parent=1 // pred_check_branch
      %46 = sbr.rel (0) target = $region29
    $region28: #{tpu_custom_call.1} parent=1 // pred_region
      %47 = dma.done [#allocation5], 1024
    $region29: #{tpu_custom_call.1} parent=1 // pred_fallthru
      _
    %v49 = vld [vmem:[#allocation2] sm:$0xf]
    %v50 = vld [vmem:[#allocation2 + $0x4] sm:$0xf]
    %v51 = vld [vmem:[%s4] sm:$0x1]
    %v52 = vld [vmem:[%s4 + $0x1] sm:$0x1]
    %v53 = vld [vmem:[%s4 + $0x2] sm:$0x1]
    %v54 = vld [vmem:[%s4 + $0x3] sm:$0x1]
    %v55 = vld [vmem:[%s1] sm:$0xf]
    %v56 = vld [vmem:[%s1 + $0x4] sm:$0xf]
    %v57 = vld [vmem:[%s1 + $0x8] sm:$0xf]
    %v58 = vld [vmem:[%s1 + $0xc] sm:$0xf]
    %v59 = vld [vmem:[%s1 + $0x10] sm:$0xf]
    %v60 = vld [vmem:[%s1 + $0x14] sm:$0xf]
    %v61 = vld [vmem:[%s1 + $0x18] sm:$0xf]
    %v62 = vld [vmem:[%s1 + $0x1c] sm:$0xf]
    %v63 = vld [vmem:[%s1 + $0x20] sm:$0xf]
    %v64 = vld [vmem:[%s1 + $0x24] sm:$0xf]
    %v65 = vld [vmem:[%s1 + $0x28] sm:$0xf]
    %v66 = vld [vmem:[%s1 + $0x2c] sm:$0xf]
    %v67 = vld [vmem:[%s1 + $0x30] sm:$0xf]
    %v68 = vld [vmem:[%s1 + $0x34] sm:$0xf]
    %v69 = vld [vmem:[%s1 + $0x38] sm:$0xf]
    %v70 = vld [vmem:[%s1 + $0x3c] sm:$0xf]
    %v73 = vunpack.c.l.b16 %v49
    %v74 = vunpack.c.l.b16 %v50
    %v75 = vpack.c.b16 %v74, %v73
    %v93 = vunpack.c.l.b16 %v55
    %v94 = vunpack.c.l.b16 %v56
    %v95 = vunpack.c.l.b16 %v57
    %v96 = vunpack.c.l.b16 %v58
    %v97 = vunpack.c.l.b16 %v59
    %v98 = vunpack.c.l.b16 %v60
    %v99 = vunpack.c.l.b16 %v61
    %v100 = vunpack.c.l.b16 %v62
    %v101 = vunpack.c.l.b16 %v63
    %v102 = vunpack.c.l.b16 %v64
    %v103 = vunpack.c.l.b16 %v65
    %v104 = vunpack.c.l.b16 %v66
    %v105 = vunpack.c.l.b16 %v67
    %v106 = vunpack.c.l.b16 %v68
    %v107 = vunpack.c.l.b16 %v69
    %v108 = vunpack.c.l.b16 %v70
    %v109 = vpack.c.b16 %v94, %v93
    %v110 = vpack.c.b16 %v96, %v95
    %v111 = vpack.c.b16 %v98, %v97
    %v112 = vpack.c.b16 %v100, %v99
    %v113 = vpack.c.b16 %v102, %v101
    %v114 = vpack.c.b16 %v104, %v103
    %v115 = vpack.c.b16 %v106, %v105
    %v116 = vpack.c.b16 %v108, %v107
    %125 = vmatprep.subr.bf16.mxu0 0
    %126 = vmatpush1.bf16.msra.mxu0 %v116
    %127 = vmatprep.subr.bf16.mxu0 0
    %128 = vmatpush1.bf16.msra.mxu0 %v115
    %129 = vmatprep.subr.bf16.mxu0 0
    %130 = vmatpush1.bf16.msra.mxu0 %v114
    %131 = vmatprep.subr.bf16.mxu0 0
    %132 = vmatpush1.bf16.msra.mxu0 %v113
    %133 = vmatprep.subr.bf16.mxu0 0
    %134 = vmatpush1.bf16.msra.mxu0 %v112
    %135 = vmatprep.subr.bf16.mxu0 0
    %136 = vmatpush1.bf16.msra.mxu0 %v111
    %137 = vmatprep.subr.bf16.mxu0 0
    %138 = vmatpush1.bf16.msra.mxu0 %v110
    %139 = vmatprep.subr.bf16.mxu0 0
    %140 = vmatpush1.bf16.msra.mxu0 %v109
    %141 = vmatprep.subr.bf16.mxu0 0
    %142 = vmatpush2.bf16.msra.mxu0 0
    %143 = vmatprep.subr.bf16.mxu0 0
    %144 = vmatpush2.bf16.msra.mxu0 0
    %145 = vmatprep.subr.bf16.mxu0 0
    %146 = vmatpush2.bf16.msra.mxu0 0
    %147 = vmatprep.subr.bf16.mxu0 0
    %148 = vmatpush2.bf16.msra.mxu0 0
    %149 = vmatprep.subr.bf16.mxu0 0
    %150 = vmatpush2.bf16.msra.mxu0 0
    %151 = vmatprep.subr.bf16.mxu0 0
    %152 = vmatpush2.bf16.msra.mxu0 0
    %153 = vmatprep.subr.bf16.mxu0 0
    %154 = vmatpush2.bf16.msra.mxu0 0
    %155 = vmatprep.subr.bf16.mxu0 0
    %156 = vmatpush2.bf16.msra.mxu0 0
    %157 = vmatprep.mubr.bf16.mxu0 0
    %158 = vmatmul.mubr.bf16.gmra.mxu0 %v75
    %v159 = vpop.f32.mrf.mxu0
    %v160 = vadd.f32 0.0, %v159
    %v161 = vpop.f32.mrf.mxu0
    %v162 = vpop.f32.mrf.mxu0
    %v163 = vadd.f32 0.0, %v162
    %v164 = vpop.f32.mrf.mxu0
    %165 = vdwg.mxu0
    %166 = vadd.xlane.f32.xlu0 %v160
    %v167 = vpop.xlane.xlu0 %166
    %168 = vadd.xlane.f32.xlu0 %v163
    %v169 = vpop.xlane.xlu0 %168
    %v170 = vmul.f32 %v167, 0.015625
    %v171 = vmul.f32 %v169, 0.015625
    %v172 = vmul.f32 %v160, %v160
    %v173 = vmul.f32 %v163, %v163
    %174 = vadd.xlane.f32.xlu0 %v172
    %v175 = vpop.xlane.xlu0 %174
    %176 = vadd.xlane.f32.xlu0 %v173
    %v177 = vpop.xlane.xlu0 %176
    %v178 = vmul.f32 %v175, 0.015625
    %v179 = vmul.f32 %v177, 0.015625
    %v180 = vmul.f32 %v170, %v170
    %v181 = vmul.f32 %v171, %v171
    %v182 = vsub.f32 %v178, %v180
    %v183 = vsub.f32 %v179, %v181
    %v184 = vmax.f32 %v182, 0.0
    %v185 = vmax.f32 %v183, 0.0
    %v186 = vadd.f32 %v184, 1e-05
    %v187 = vadd.f32 %v185, 1e-05
    %v188 = vrsqrt.pop %v186
    %v189 = vrsqrt.pop %v187
    %v190 = vsub.f32 %v160, %v170
    %v191 = vsub.f32 %v163, %v171
    %v192 = vmul.f32 %v190, %v188
    %v193 = vmul.f32 %v191, %v189
    %v194 = vpack.c.bf16 %v193, %v192
    %v195 = vpack.c.bf16 %v51, %v51
    %v197 = vpack.i.b16 %v195, %v195
    %v199 = vlaneseq
    %v200 = vshrl.u32 %v199, 7
    %v201 = vsub.s32 0, %v200
    %v202 = vrot.slane %v197, %v201
    %v203 = vmul.bf16 %v194, %v202
    %v204 = vpack.c.bf16 %v52, %v52
    %v206 = vpack.i.b16 %v204, %v204
    %v208 = vlaneseq
    %v209 = vshrl.u32 %v208, 7
    %v210 = vsub.s32 0, %v209
    %v211 = vrot.slane %v206, %v210
    %v212 = vadd.bf16 %v203, %v211
    %v213 = vmax.bf16 %v212, 0
    %v214 = vld [vmem:[#allocation4] sm:$0xf]
    %v215 = vld [vmem:[#allocation4 + $0x4] sm:$0xf]
    %v216 = vld [vmem:[#allocation4 + $0x8] sm:$0xf]
    %v217 = vld [vmem:[#allocation4 + $0xc] sm:$0xf]
    %v218 = vld [vmem:[#allocation4 + $0x10] sm:$0xf]
    %v219 = vld [vmem:[#allocation4 + $0x14] sm:$0xf]
    %v220 = vld [vmem:[#allocation4 + $0x18] sm:$0xf]
    %v221 = vld [vmem:[#allocation4 + $0x1c] sm:$0xf]
    %v222 = vld [vmem:[#allocation4 + $0x20] sm:$0xf]
    %v223 = vld [vmem:[#allocation4 + $0x24] sm:$0xf]
    %v224 = vld [vmem:[#allocation4 + $0x28] sm:$0xf]
    %v225 = vld [vmem:[#allocation4 + $0x2c] sm:$0xf]
    %v226 = vld [vmem:[#allocation4 + $0x30] sm:$0xf]
    %v227 = vld [vmem:[#allocation4 + $0x34] sm:$0xf]
    %v228 = vld [vmem:[#allocation4 + $0x38] sm:$0xf]
    %v229 = vld [vmem:[#allocation4 + $0x3c] sm:$0xf]
    %v246 = vunpack.c.l.b16 %v214
    %v247 = vunpack.c.l.b16 %v215
    %v248 = vunpack.c.l.b16 %v216
    %v249 = vunpack.c.l.b16 %v217
    %v250 = vunpack.c.l.b16 %v218
    %v251 = vunpack.c.l.b16 %v219
    %v252 = vunpack.c.l.b16 %v220
    %v253 = vunpack.c.l.b16 %v221
    %v254 = vunpack.c.l.b16 %v222
    %v255 = vunpack.c.l.b16 %v223
    %v256 = vunpack.c.l.b16 %v224
    %v257 = vunpack.c.l.b16 %v225
    %v258 = vunpack.c.l.b16 %v226
    %v259 = vunpack.c.l.b16 %v227
    %v260 = vunpack.c.l.b16 %v228
    %v261 = vunpack.c.l.b16 %v229
    %v262 = vpack.c.b16 %v247, %v246
    %v263 = vpack.c.b16 %v249, %v248
    %v264 = vpack.c.b16 %v251, %v250
    %v265 = vpack.c.b16 %v253, %v252
    %v266 = vpack.c.b16 %v255, %v254
    %v267 = vpack.c.b16 %v257, %v256
    %v268 = vpack.c.b16 %v259, %v258
    %v269 = vpack.c.b16 %v261, %v260
    %278 = vmatprep.subr.bf16.mxu0 0
    %279 = vmatpush1.bf16.msra.mxu0 %v269
    %280 = vmatprep.subr.bf16.mxu0 0
    %281 = vmatpush1.bf16.msra.mxu0 %v268
    %282 = vmatprep.subr.bf16.mxu0 0
    %283 = vmatpush1.bf16.msra.mxu0 %v267
    %284 = vmatprep.subr.bf16.mxu0 0
    %285 = vmatpush1.bf16.msra.mxu0 %v266
    %286 = vmatprep.subr.bf16.mxu0 0
    %287 = vmatpush1.bf16.msra.mxu0 %v265
    %288 = vmatprep.subr.bf16.mxu0 0
    %289 = vmatpush1.bf16.msra.mxu0 %v264
    %290 = vmatprep.subr.bf16.mxu0 0
    %291 = vmatpush1.bf16.msra.mxu0 %v263
    %292 = vmatprep.subr.bf16.mxu0 0
    %293 = vmatpush1.bf16.msra.mxu0 %v262
    %294 = vmatprep.subr.bf16.mxu0 0
    %295 = vmatpush2.bf16.msra.mxu0 0
    %296 = vmatprep.subr.bf16.mxu0 0
    %297 = vmatpush2.bf16.msra.mxu0 0
    %298 = vmatprep.subr.bf16.mxu0 0
    %299 = vmatpush2.bf16.msra.mxu0 0
    %300 = vmatprep.subr.bf16.mxu0 0
    %301 = vmatpush2.bf16.msra.mxu0 0
    %302 = vmatprep.subr.bf16.mxu0 0
    %303 = vmatpush2.bf16.msra.mxu0 0
    %304 = vmatprep.subr.bf16.mxu0 0
    %305 = vmatpush2.bf16.msra.mxu0 0
    %306 = vmatprep.subr.bf16.mxu0 0
    %307 = vmatpush2.bf16.msra.mxu0 0
    %308 = vmatprep.subr.bf16.mxu0 0
    %309 = vmatpush2.bf16.msra.mxu0 0
    %310 = vmatprep.mubr.bf16.mxu0 0
    %311 = vmatmul.mubr.bf16.gmra.mxu0 %v213
    %v312 = vpop.f32.mrf.mxu0
    %v313 = vadd.f32 0.0, %v312
    %v314 = vpop.f32.mrf.mxu0
    %v315 = vpop.f32.mrf.mxu0
    %v316 = vadd.f32 0.0, %v315
    %v317 = vpop.f32.mrf.mxu0
    %318 = vdwg.mxu0
    %319 = vadd.xlane.f32.xlu0 %v313
    %v320 = vpop.xlane.xlu0 %319
    %321 = vadd.xlane.f32.xlu0 %v316
    %v322 = vpop.xlane.xlu0 %321
    %v323 = vmul.f32 %v320, 0.03125
    %v324 = vmul.f32 %v322, 0.03125
    %v325 = vmul.f32 %v313, %v313
    %v326 = vmul.f32 %v316, %v316
    %327 = vadd.xlane.f32.xlu0 %v325
    %v328 = vpop.xlane.xlu0 %327
    %329 = vadd.xlane.f32.xlu0 %v326
    %v330 = vpop.xlane.xlu0 %329
    %v331 = vmul.f32 %v328, 0.03125
    %v332 = vmul.f32 %v330, 0.03125
    %v333 = vmul.f32 %v323, %v323
    %v334 = vmul.f32 %v324, %v324
    %v335 = vsub.f32 %v331, %v333
    %v336 = vsub.f32 %v332, %v334
    %v337 = vmax.f32 %v335, 0.0
    %v338 = vmax.f32 %v336, 0.0
    %v339 = vadd.f32 %v337, 1e-05
    %v340 = vadd.f32 %v338, 1e-05
    %v341 = vrsqrt.pop %v339
    %v342 = vrsqrt.pop %v340
    %v343 = vsub.f32 %v313, %v323
    %v344 = vsub.f32 %v316, %v324
    %v345 = vmul.f32 %v343, %v341
    %v346 = vmul.f32 %v344, %v342
    %v347 = vpack.c.bf16 %v346, %v345
    %v348 = vpack.c.bf16 %v53, %v53
    %v350 = vpack.i.b16 %v348, %v348
    %v352 = vlaneseq
    %v353 = vshrl.u32 %v352, 7
    %v354 = vsub.s32 0, %v353
    %v355 = vrot.slane %v350, %v354
    %v356 = vmul.bf16 %v347, %v355
    %v357 = vpack.c.bf16 %v54, %v54
    %v359 = vpack.i.b16 %v357, %v357
    %v361 = vlaneseq
    %v362 = vshrl.u32 %v361, 7
    %v363 = vsub.s32 0, %v362
    %v364 = vrot.slane %v359, %v363
    %v365 = vadd.bf16 %v356, %v364
    %v366 = vmax.bf16 %v365, 0
    %v367 = vld [vmem:[%s3] sm:$0xf]
    %v368 = vld [vmem:[%s3 + $0x4] sm:$0xf]
    %v369 = vld [vmem:[%s3 + $0x8] sm:$0xf]
    %v370 = vld [vmem:[%s3 + $0xc] sm:$0xf]
    %v371 = vld [vmem:[%s3 + $0x10] sm:$0xf]
    %v372 = vld [vmem:[%s3 + $0x14] sm:$0xf]
    %v373 = vld [vmem:[%s3 + $0x18] sm:$0xf]
    %v374 = vld [vmem:[%s3 + $0x1c] sm:$0xf]
    %v375 = vld [vmem:[%s3 + $0x20] sm:$0xf]
    %v376 = vld [vmem:[%s3 + $0x24] sm:$0xf]
    %v377 = vld [vmem:[%s3 + $0x28] sm:$0xf]
    %v378 = vld [vmem:[%s3 + $0x2c] sm:$0xf]
    %v379 = vld [vmem:[%s3 + $0x30] sm:$0xf]
    %v380 = vld [vmem:[%s3 + $0x34] sm:$0xf]
    %v381 = vld [vmem:[%s3 + $0x38] sm:$0xf]
    %v382 = vld [vmem:[%s3 + $0x3c] sm:$0xf]
    %v399 = vunpack.c.l.b16 %v367
    %v400 = vunpack.c.l.b16 %v368
    %v401 = vunpack.c.l.b16 %v369
    %v402 = vunpack.c.l.b16 %v370
    %v403 = vunpack.c.l.b16 %v371
    %v404 = vunpack.c.l.b16 %v372
    %v405 = vunpack.c.l.b16 %v373
    %v406 = vunpack.c.l.b16 %v374
    %v407 = vunpack.c.l.b16 %v375
    %v408 = vunpack.c.l.b16 %v376
    %v409 = vunpack.c.l.b16 %v377
    %v410 = vunpack.c.l.b16 %v378
    %v411 = vunpack.c.l.b16 %v379
    %v412 = vunpack.c.l.b16 %v380
    %v413 = vunpack.c.l.b16 %v381
    %v414 = vunpack.c.l.b16 %v382
    %v415 = vpack.c.b16 %v400, %v399
    %v416 = vpack.c.b16 %v402, %v401
    %v417 = vpack.c.b16 %v404, %v403
    %v418 = vpack.c.b16 %v406, %v405
    %v419 = vpack.c.b16 %v408, %v407
    %v420 = vpack.c.b16 %v410, %v409
    %v421 = vpack.c.b16 %v412, %v411
    %v422 = vpack.c.b16 %v414, %v413
    %431 = vmatprep.subr.bf16.mxu0 0
    %432 = vmatpush1.bf16.msra.mxu0 %v422
    %433 = vmatprep.subr.bf16.mxu0 0
    %434 = vmatpush1.bf16.msra.mxu0 %v421
    %435 = vmatprep.subr.bf16.mxu0 0
    %436 = vmatpush1.bf16.msra.mxu0 %v420
    %437 = vmatprep.subr.bf16.mxu0 0
    %438 = vmatpush1.bf16.msra.mxu0 %v419
    %439 = vmatprep.subr.bf16.mxu0 0
    %440 = vmatpush1.bf16.msra.mxu0 %v418
    %441 = vmatprep.subr.bf16.mxu0 0
    %442 = vmatpush1.bf16.msra.mxu0 %v417
    %443 = vmatprep.subr.bf16.mxu0 0
    %444 = vmatpush1.bf16.msra.mxu0 %v416
    %445 = vmatprep.subr.bf16.mxu0 0
    %446 = vmatpush1.bf16.msra.mxu0 %v415
    %447 = vmatprep.subr.bf16.mxu0 0
    %448 = vmatpush2.bf16.msra.mxu0 0
    %449 = vmatprep.subr.bf16.mxu0 0
    %450 = vmatpush2.bf16.msra.mxu0 0
    %451 = vmatprep.subr.bf16.mxu0 0
    %452 = vmatpush2.bf16.msra.mxu0 0
    %453 = vmatprep.subr.bf16.mxu0 0
    %454 = vmatpush2.bf16.msra.mxu0 0
    %455 = vmatprep.subr.bf16.mxu0 0
    %456 = vmatpush2.bf16.msra.mxu0 0
    %457 = vmatprep.subr.bf16.mxu0 0
    %458 = vmatpush2.bf16.msra.mxu0 0
    %459 = vmatprep.subr.bf16.mxu0 0
    %460 = vmatpush2.bf16.msra.mxu0 0
    %461 = vmatprep.subr.bf16.mxu0 0
    %462 = vmatpush2.bf16.msra.mxu0 0
    %463 = vmatprep.mubr.bf16.mxu0 0
    %464 = vmatmul.mubr.bf16.gmra.mxu0 %v366
    %v465 = vpop.f32.mrf.mxu0
    %v466 = vadd.f32 0.0, %v465
    %v467 = vpop.f32.mrf.mxu0
    %v468 = vpop.f32.mrf.mxu0
    %v469 = vadd.f32 0.0, %v468
    %v470 = vpop.f32.mrf.mxu0
    %471 = vdwg.mxu0
    %v472 = vxor.u32 %v466, 2147483648
    %v473 = vxor.u32 %v469, 2147483648
    %v474 = vmul.f32 %v472, 1.442695
    %v475 = vpow.pop %v474
    %v476 = vmul.f32 %v473, 1.442695
    %v477 = vpow.pop %v476
    %v478 = vadd.f32 %v475, 1.0
    %v479 = vadd.f32 %v477, 1.0
    %v480 = vrcp.pop %v478
    %v481 = vmul.f32 1.0, %v480
    %v482 = vrcp.pop %v479
    %v483 = vmul.f32 1.0, %v482
    %vm484 = vcmask 31744
    %485 = vst.msk [vmem:[%s5] sm:$0xff] %vm484, %v481
    %486 = vst.msk [vmem:[%s5 + $0x8] sm:$0xff] %vm484, %v483
    // Predicated region
    $region30: #{tpu_custom_call.1} parent=1 // pred_check
      _
    $region31: #{tpu_custom_call.1} parent=1 // pred_check_branch
      %488 = sbr.rel (0) target = $region33
    $region32: #{tpu_custom_call.1} parent=1 // pred_region
      _
    $region33: #{tpu_custom_call.1} parent=1 // pred_fallthru
      _
    // Predicated region
    $region34: #{tpu_custom_call.1} parent=1 // pred_check
      _
    $region35: #{tpu_custom_call.1} parent=1 // pred_check_branch
      %490 = sbr.rel (0) target = $region37
    $region36: #{tpu_custom_call.1} parent=1 // pred_region
      _
    $region37: #{tpu_custom_call.1} parent=1 // pred_fallthru
      _
    %491 = vsyncpa [#allocation3], 1
    %492 = vsyncpa [#allocation5], 1

</llo_original>
